<compile_context>
chip_gen: v7x
topology: tpu7x:2x2x1
jax: 0.10.0
libtpu: 0.0.40
codegen_flags: <defaults>
</compile_context>

<pallas_src>
import jax
import jax.numpy as jnp
from jax.experimental import pallas as pl
from jax.experimental.pallas import tpu as pltpu


# ---------------------------------------------------------------------------
# Primary path: zero-copy identity (output aliases the input buffer).
# ---------------------------------------------------------------------------
def _identity_alias_kernel(x_hbm_ref, o_hbm_ref):
    # Output buffer IS the input buffer (input_output_aliases={0: 0}); nothing
    # to compute and nothing to move, so the body is a no-op.
    del x_hbm_ref, o_hbm_ref


def dummy_forward(x):
    """Dummy.forward (identity). Zero-copy: output aliases the input buffer.

    Note: if the caller does not donate x (e.g. plain eager call), XLA inserts
    the unavoidable defensive copy itself; with donation at the jit boundary
    this is a true no-op.
    """
    return pl.pallas_call(
        _identity_alias_kernel,
        out_shape=jax.ShapeDtypeStruct(x.shape, x.dtype),
        in_specs=[pl.BlockSpec(memory_space=pl.ANY)],
        out_specs=pl.BlockSpec(memory_space=pl.ANY),
        input_output_aliases={0: 0},
        cost_estimate=pl.CostEstimate(flops=0, transcendentals=0, bytes_accessed=0),
    )(x)


# ---------------------------------------------------------------------------
# Optional path: materialized copy (fresh output buffer) via chunked HBM DMA.
# ---------------------------------------------------------------------------
def _whole_copy_kernel(x_hbm_ref, o_hbm_ref, copy_sem):
    cp = pltpu.make_async_copy(x_hbm_ref, o_hbm_ref, copy_sem)
    cp.start()
    cp.wait()


def _make_chunked_copy_kernel(chunk_bounds):
    # chunk_bounds: static tuple of (start, size) along the leading axis.
    def kernel(x_hbm_ref, o_hbm_ref, copy_sems):
        copies = []
        # Issue all chunk DMAs first (N descriptors in flight), then wait all.
        for i, (start, size) in enumerate(chunk_bounds):
            cp = pltpu.make_async_copy(
                x_hbm_ref.at[pl.ds(start, size)],
                o_hbm_ref.at[pl.ds(start, size)],
                copy_sems.at[i],
            )
            cp.start()
            copies.append(cp)
        for cp in copies:
            cp.wait()

    return kernel


def dummy_forward_copy(x, num_chunks=4):
    """Identity that returns a freshly materialized copy (HBM->HBM DMA only)."""
    nbytes = x.size * x.dtype.itemsize
    cost = pl.CostEstimate(flops=0, transcendentals=0, bytes_accessed=2 * nbytes)
    common = dict(
        out_shape=jax.ShapeDtypeStruct(x.shape, x.dtype),
        in_specs=[pl.BlockSpec(memory_space=pl.ANY)],
        out_specs=pl.BlockSpec(memory_space=pl.ANY),
        cost_estimate=cost,
    )

    if x.ndim == 0 or x.shape[0] < 2:
        # Too small to chunk along the leading axis: single whole-tensor DMA.
        return pl.pallas_call(
            _whole_copy_kernel,
            scratch_shapes=[pltpu.SemaphoreType.DMA(())],
            **common,
        )(x)

    # Static chunking along the leading axis (handles non-divisible sizes).
    lead = x.shape[0]
    n = min(num_chunks, lead)
    base, rem = divmod(lead, n)
    bounds = []
    start = 0
    for i in range(n):
        size = base + (1 if i < rem else 0)
        bounds.append((start, size))
        start += size

    # TODO(synk): on v7x one could additionally shard these chunk DMAs across
    # both TensorCores (grid=(2,) + "parallel"); irrelevant to the zero-copy
    # primary path and v5e/v6e (1 TC/chip), so not done here.
    kernel = _make_chunked_copy_kernel(tuple(bounds))
    return pl.pallas_call(
        kernel,
        scratch_shapes=[pltpu.SemaphoreType.DMA((n,))],
        **common,
    )(x)


if __name__ == "__main__":
    # Dummy(cfg, input_dim, output_dim) has no parameters; nothing to initialize.
    key = jax.random.PRNGKey(0)

    # NCHW input consistent with a conv-style module: batch=2, channels=4, 16x16.
    x = jax.random.normal(key, (2, 4, 16, 16), dtype=jnp.float32)

    # Primary zero-copy identity.
    y = jax.block_until_ready(dummy_forward(x))
    assert y.shape == x.shape and y.dtype == x.dtype
    assert bool(jnp.all(y == x))

    # Materialized-copy identity (chunked DMA).
    y_copy = jax.block_until_ready(dummy_forward_copy(x))
    assert y_copy.shape == x.shape and y_copy.dtype == x.dtype
    assert bool(jnp.all(y_copy == x))

    # Shape with no 8/128 divisibility — ANY-space design has no layout limits.
    x2 = jax.random.normal(jax.random.PRNGKey(0), (3, 5, 7), dtype=jnp.float32)
    y2 = jax.block_until_ready(dummy_forward(x2))
    assert y2.shape == x2.shape and y2.dtype == x2.dtype
    assert bool(jnp.all(y2 == x2))
    y2_copy = jax.block_until_ready(dummy_forward_copy(x2, num_chunks=3))
    assert bool(jnp.all(y2_copy == x2))

    print("KERNEL_OK")
</pallas_src>

<mosaic_0001>
module attributes {stable_mosaic.version = 11 : i64} {
  func.func @_identity_alias_kernel(%arg0: memref<2x4x16x16xf32, #tpu.memory_space<any>>, %arg1: memref<2x4x16x16xf32, #tpu.memory_space<any>>) attributes {dimension_semantics = [], scalar_prefetch = 0 : i64, scratch_operands = 0 : i64, tpu.core_type = #tpu.core_type<tc>} {
    return
  }
}

</mosaic_0001>

<llo_original>
// kernel: tpu_custom_call.1
$region0: #{tpu_custom_call.1}
  #allocation0 [shape = 'u32[]', space=smem, size = 0x4, offset = 0x4, fixed_abs, tag = 'smem constant byte address 0x4 - core index']
  #allocation1 [shape = 'u32[144,128]{1,0:T(1,128)}', space=vmem, size = 0x12000, scoped, tag = 'internal scratch']
  %s0 = inlined_call_operand.hbm [shape: f32[2,4,16,16], index: 0, kind: input, shape index: {}, may-alias: {0,1}]
  %s1 = inlined_call_operand.hbm [shape: f32[2,4,16,16], index: 1, kind: output, shape index: {}, may-alias: {0,1}]
  %s2 = sld [smem:[#allocation0]]
  $region2: #{tpu_custom_call.1} parent=0
    _
  %s4 = ssub.s32 1, %s2
  %s5 = scalar_select 0, %s4, %s2

</llo_original>
